<compile_context>
chip_gen: v6e
topology: v6e:2x2x1
jax: 0.10.0
libtpu: 0.0.40
codegen_flags: <defaults>
</compile_context>

<pallas_src>
import functools

import jax
import jax.numpy as jnp
from jax.experimental import pallas as pl
from jax.experimental.pallas import tpu as pltpu

_NEG = -1e30     # bias for padded (fake) classes: exp -> 0, never affects softmax
_LANE = 128


def _round_up(x, m):
    return (x + m - 1) // m * m


def _chip_vmem_bytes():
    try:
        info = pltpu.get_tpu_info()
        return int(getattr(info, "vmem_capacity_bytes", 128 * 1024 * 1024))
    except Exception:
        return 128 * 1024 * 1024


def _pick_k_tile(f):
    """Contraction tile for the flat path (feature axis)."""
    if f <= 2048:
        return f
    for tk in (2048, 1024, 512):
        if f % tk == 0:
            return tk
    return 512   # feature axis will be zero-padded up to a multiple of 512


def _pick_batch_block(n, per_sample_bytes, pack, budget_bytes):
    """Largest batch tile (multiple of the dtype sublane pack, <=256) whose x block fits
    the VMEM budget; guarantees >=2 grid steps for n >= 16 (megacore / v7x sharding)."""
    cap = 256
    if n >= 16:
        cap = min(cap, _round_up(-(-n // 2), pack))   # at least 2 grid steps
    bn = budget_bytes // max(per_sample_bytes, 1)
    bn = min(bn, cap, n)
    if bn >= n:
        return n
    if bn >= 256:
        return 256
    if bn >= 128:
        return 128
    bn = (bn // pack) * pack
    return max(bn, min(n, pack))


def _softmax_store(logits, logits_ref, probs_ref):
    """Store logits; numerically-stable softmax with EUP approximate reciprocal."""
    logits_ref[...] = logits
    m = jnp.max(logits, axis=1, keepdims=True)
    e = jnp.exp(logits - m)
    denom = jnp.sum(e, axis=1, keepdims=True)
    probs_ref[...] = e * pl.reciprocal(denom, approx=True)


def _pool_classifier_kernel(x_ref, w_ref, b_ref, logits_ref, probs_ref):
    # x_ref: (bn, S, C) channels-last.  Sum over S in f32 (the 1/S scale is folded into
    # the weight by the wrapper), then cast down to the weight dtype for the MXU.
    pooled = jnp.sum(x_ref[...].astype(jnp.float32), axis=1)       # (bn, C) f32
    pooled = pooled.astype(w_ref.dtype)                            # bf16 fast path if w is bf16
    logits = jnp.dot(pooled, w_ref[...], preferred_element_type=jnp.float32) + b_ref[...]
    _softmax_store(logits, logits_ref, probs_ref)


def _flat_classifier_kernel(x_ref, w_ref, b_ref, logits_ref, probs_ref, acc_ref):
    # Contraction-tiled linear layer: grid = (batch_blocks, k_blocks).
    k = pl.program_id(1)

    @pl.when(k == 0)
    def _():
        acc_ref[...] = jnp.zeros_like(acc_ref)

    acc_ref[...] += jnp.dot(x_ref[...], w_ref[...], preferred_element_type=jnp.float32)

    @pl.when(k == pl.num_programs(1) - 1)
    def _():
        logits = acc_ref[...] + b_ref[...]
        _softmax_store(logits, logits_ref, probs_ref)


def image_classifier_forward(backbone_features, weight, bias, *, use_average_pooling=True):
    """Pallas TPU forward for ImageClassifier.

    backbone_features: (N, C, H, W) NCHW, any float dtype (kept native for the DMA/MXU).
    weight: (num_classes, n_features) (PyTorch nn.Linear layout), bias: (num_classes,).
    Returns (logits, probabilities, class_prediction[int32]).
    """
    N, C, H, W = backbone_features.shape
    num_classes, n_features = weight.shape
    kpad = _round_up(max(num_classes, _LANE), _LANE)

    itemsize = jnp.dtype(backbone_features.dtype).itemsize
    pack = max(8, 32 // itemsize)                 # sublane pack: 8 f32 / 16 bf16 / 32 int8

    # Generation-aware VMEM budgets: tight on 64-MiB-VMEM chips (v7x), roomy on 128-MiB.
    vmem_cap = _chip_vmem_bytes()
    if vmem_cap <= 64 * 1024 * 1024:
        vmem_limit, x_budget = 40 * 1024 * 1024, 4 * 1024 * 1024
    else:
        vmem_limit, x_budget = 96 * 1024 * 1024, 16 * 1024 * 1024

    # Pre-transpose weight to (n_features, kpad); pad the class dim to a lane-dense
    # multiple of 128 (padded classes: zero weight, -1e30 bias).  Keep native dtype.
    w_t = jnp.swapaxes(weight, 0, 1)
    b_f32 = bias.astype(jnp.float32)
    if kpad != num_classes:
        w_t = jnp.pad(w_t, ((0, 0), (0, kpad - num_classes)))
        b_f32 = jnp.pad(b_f32, (0, kpad - num_classes), constant_values=_NEG)
    b_f32 = b_f32.reshape(1, kpad)

    const_spec = functools.partial(pl.BlockSpec, pipeline_mode=pl.Buffered(1))

    if use_average_pooling:
        assert C == n_features, "n_features must equal channel count when pooling"
        s = H * W
        # Fold the 1/S pooling scale into the (already-transformed) weight: free.
        w_t = w_t * jnp.asarray(1.0 / s, dtype=w_t.dtype)
        # Channels-last slab: lane dim = C (typically a multiple of 128), spatial
        # reduction runs in the sublane direction (VPU, not XLU).
        x = jnp.transpose(backbone_features.reshape(N, C, s), (0, 2, 1))   # (N, S, C)

        per_sample = _round_up(s, pack) * _round_up(C, _LANE) * itemsize   # tiled VMEM bytes
        bn = _pick_batch_block(N, per_sample, pack, x_budget)
        grid = (pl.cdiv(N, bn),)

        kernel = _pool_classifier_kernel
        in_specs = [
            pl.BlockSpec((bn, s, C), lambda i: (i, 0, 0)),
            const_spec(w_t.shape, lambda i: (0, 0)),        # grid-invariant -> single buffer
            const_spec(b_f32.shape, lambda i: (0, 0)),
        ]
        out_specs = (
            pl.BlockSpec((bn, kpad), lambda i: (i, 0)),
            pl.BlockSpec((bn, kpad), lambda i: (i, 0)),
        )
        scratch_shapes = []
        dims = ("parallel",)
        flops = 2 * N * C * kpad + N * C * s
        bytes_accessed = x.size * itemsize + w_t.size * jnp.dtype(w_t.dtype).itemsize \
            + 2 * N * kpad * 4
    else:
        f = C * H * W
        assert f == n_features, "n_features must equal C*H*W when not pooling"
        x = backbone_features.reshape(N, f)                  # lane-dense 2-D slab
        tk = _pick_k_tile(f)
        fpad = _round_up(f, tk)
        if fpad != f:                                        # zero-pad contraction axis
            x = jnp.pad(x, ((0, 0), (0, fpad - f)))
            w_t = jnp.pad(w_t, ((0, fpad - f), (0, 0)))
        nk = fpad // tk

        per_sample = _round_up(tk, _LANE) * itemsize
        bn = _pick_batch_block(N, per_sample, pack, x_budget)
        grid = (pl.cdiv(N, bn), nk)

        kernel = _flat_classifier_kernel
        in_specs = [
            pl.BlockSpec((bn, tk), lambda i, k: (i, k)),
            pl.BlockSpec((tk, kpad), lambda i, k: (k, 0)),   # K-tiled weight (double-buffered)
            const_spec(b_f32.shape, lambda i, k: (0, 0)),
        ]
        out_specs = (
            pl.BlockSpec((bn, kpad), lambda i, k: (i, 0)),
            pl.BlockSpec((bn, kpad), lambda i, k: (i, 0)),
        )
        scratch_shapes = [pltpu.VMEM((bn, kpad), jnp.float32)]
        dims = ("parallel", "arbitrary")
        flops = 2 * N * fpad * kpad
        bytes_accessed = x.size * itemsize \
            + pl.cdiv(N, bn) * w_t.size * jnp.dtype(w_t.dtype).itemsize \
            + 2 * N * kpad * 4

    cost = pl.CostEstimate(
        flops=int(flops),
        transcendentals=int(N * kpad),
        bytes_accessed=int(bytes_accessed),
    )

    logits_p, probs_p = pl.pallas_call(
        kernel,
        out_shape=(
            jax.ShapeDtypeStruct((N, kpad), jnp.float32),    # logits (class-padded)
            jax.ShapeDtypeStruct((N, kpad), jnp.float32),    # probabilities (class-padded)
        ),
        grid=grid,
        in_specs=in_specs,
        out_specs=out_specs,
        scratch_shapes=scratch_shapes,
        compiler_params=pltpu.CompilerParams(
            dimension_semantics=dims,
            vmem_limit_bytes=vmem_limit,
        ),
        cost_estimate=cost,
    )(x, w_t, b_f32)

    logits = logits_p[:, :num_classes]
    probs = probs_p[:, :num_classes]
    # argmax(softmax(x)) == argmax(x): done as a tiny trailing XLA op so the kernel keeps
    # only lane-dense outputs (no (N,1) masked stores / XLU min-reduce inside the kernel).
    # TODO(synk): torch.argmax returns int64; int32 returned here (JAX x64 off by default).
    pred = jnp.argmax(logits, axis=1).astype(jnp.int32)
    return logits, probs, pred


if __name__ == "__main__":
    # Small shapes consistent with the module: batch=2, channels=4, spatial=16x16.
    N, C, H, W = 2, 4, 16, 16
    num_classes = 8

    key = jax.random.PRNGKey(0)
    kx, kw, kb, kw2, kb2 = jax.random.split(key, 5)
    backbone_features = jax.random.normal(kx, (N, C, H, W), dtype=jnp.float32)

    # --- use_average_pooling=True (n_features = C) ---
    bound = 1.0 / jnp.sqrt(jnp.float32(C))
    weight = jax.random.uniform(kw, (num_classes, C), jnp.float32, -bound, bound)
    bias = jax.random.uniform(kb, (num_classes,), jnp.float32, -bound, bound)

    logits, probs, pred = image_classifier_forward(
        backbone_features, weight, bias, use_average_pooling=True
    )
    jax.block_until_ready((logits, probs, pred))

    pooled_ref = jnp.mean(backbone_features, axis=(2, 3))
    logits_ref = pooled_ref @ weight.T + bias
    probs_ref = jax.nn.softmax(logits_ref, axis=1)
    pred_ref = jnp.argmax(probs_ref, axis=1).astype(jnp.int32)
    assert jnp.allclose(logits, logits_ref, atol=1e-3), "pooled logits mismatch"
    assert jnp.allclose(probs, probs_ref, atol=2e-3), "pooled probs mismatch"
    assert jnp.array_equal(pred, pred_ref), "pooled argmax mismatch"

    # --- use_average_pooling=False (n_features = C*H*W) ---
    F = C * H * W
    bound2 = 1.0 / jnp.sqrt(jnp.float32(F))
    weight2 = jax.random.uniform(kw2, (num_classes, F), jnp.float32, -bound2, bound2)
    bias2 = jax.random.uniform(kb2, (num_classes,), jnp.float32, -bound2, bound2)

    logits2, probs2, pred2 = image_classifier_forward(
        backbone_features, weight2, bias2, use_average_pooling=False
    )
    jax.block_until_ready((logits2, probs2, pred2))

    flat_ref = backbone_features.reshape(N, F)
    logits2_ref = flat_ref @ weight2.T + bias2
    probs2_ref = jax.nn.softmax(logits2_ref, axis=1)
    pred2_ref = jnp.argmax(probs2_ref, axis=1).astype(jnp.int32)
    assert jnp.allclose(logits2, logits2_ref, atol=1e-2), "flat logits mismatch"
    assert jnp.allclose(probs2, probs2_ref, atol=2e-3), "flat probs mismatch"
    assert jnp.array_equal(pred2, pred2_ref), "flat argmax mismatch"

    print("KERNEL_OK")
</pallas_src>

<mosaic_0001>
module attributes {stable_mosaic.version = 11 : i64} {
  func.func @_pool_classifier_kernel(%arg0: i32, %arg1: memref<2x256x4xf32, #tpu.memory_space<vmem>>, %arg2: memref<4x128xf32, #tpu.memory_space<vmem>>, %arg3: memref<1x128xf32, #tpu.memory_space<vmem>>, %arg4: memref<2x128xf32, #tpu.memory_space<vmem>>, %arg5: memref<2x128xf32, #tpu.memory_space<vmem>>) attributes {dimension_semantics = [#tpu.dimension_semantics<parallel>], iteration_bounds = array<i64: 1>, scalar_prefetch = 0 : i64, scratch_operands = 0 : i64, tpu.core_type = #tpu.core_type<tc>, window_params = [{transform_indices = @transform_0, window_bounds = array<i64: 2, 256, 4>}, {pipeline_mode = #tpu.pipeline_mode<synchronous>, transform_indices = @transform_1, window_bounds = array<i64: 4, 128>}, {pipeline_mode = #tpu.pipeline_mode<synchronous>, transform_indices = @transform_2, window_bounds = array<i64: 1, 128>}, {transform_indices = @transform_3, window_bounds = array<i64: 2, 128>}, {transform_indices = @transform_4, window_bounds = array<i64: 2, 128>}]} {
    %c0 = arith.constant 0 : index
    %c0_0 = arith.constant 0 : index
    %c0_1 = arith.constant 0 : index
    %0 = vector.load %arg1[%c0, %c0_0, %c0_1] : memref<2x256x4xf32, #tpu.memory_space<vmem>>, vector<2x256x4xf32>
    %cst = arith.constant dense<0.000000e+00> : vector<2x4xf32>
    %1 = vector.multi_reduction <add>, %0, %cst [1] : vector<2x256x4xf32> to vector<2x4xf32>
    %c0_2 = arith.constant 0 : index
    %c0_3 = arith.constant 0 : index
    %2 = vector.load %arg2[%c0_2, %c0_3] : memref<4x128xf32, #tpu.memory_space<vmem>>, vector<4x128xf32>
    %cst_4 = arith.constant dense<0.000000e+00> : vector<2x128xf32>
    %3 = tpu.matmul %1, %2, %cst_4 {dimension_numbers = #tpu.dot_dimension_numbers<[1], [0], [0], [1], [0, 0, 1, 1], [], []>} : vector<2x4xf32>, vector<4x128xf32>, vector<2x128xf32> -> vector<2x128xf32>
    %c0_5 = arith.constant 0 : index
    %c0_6 = arith.constant 0 : index
    %4 = vector.load %arg3[%c0_5, %c0_6] : memref<1x128xf32, #tpu.memory_space<vmem>>, vector<1x128xf32>
    %5 = vector.broadcast %4 : vector<1x128xf32> to vector<2x128xf32>
    %6 = arith.addf %3, %5 : vector<2x128xf32>
    %c0_7 = arith.constant 0 : index
    %c0_8 = arith.constant 0 : index
    %7 = vector.load %arg4[%c0_7, %c0_8] : memref<2x128xf32, #tpu.memory_space<vmem>>, vector<2x128xf32>
    tpu.vector_store %arg4[%c0_7, %c0_8], %6 {strides = array<i32>} : memref<2x128xf32, #tpu.memory_space<vmem>>, vector<2x128xf32>,
    %cst_9 = arith.constant dense<0xFF800000> : vector<2xf32>
    %8 = vector.multi_reduction <maximumf>, %6, %cst_9 [1] : vector<2x128xf32> to vector<2xf32>
    %9 = vector.shape_cast %8 : vector<2xf32> to vector<2x1xf32>
    %10 = vector.broadcast %9 : vector<2x1xf32> to vector<2x128xf32>
    %11 = arith.subf %6, %10 : vector<2x128xf32>
    %12 = math.exp %11 : vector<2x128xf32>
    %cst_10 = arith.constant dense<0.000000e+00> : vector<2xf32>
    %13 = vector.multi_reduction <add>, %12, %cst_10 [1] : vector<2x128xf32> to vector<2xf32>
    %14 = vector.shape_cast %13 : vector<2xf32> to vector<2x1xf32>
    %15 = tpu.reciprocal %14 {approx = true} : vector<2x1xf32> -> vector<2x1xf32>
    %16 = vector.broadcast %15 : vector<2x1xf32> to vector<2x128xf32>
    %17 = arith.mulf %12, %16 : vector<2x128xf32>
    %c0_11 = arith.constant 0 : index
    %c0_12 = arith.constant 0 : index
    %18 = vector.load %arg5[%c0_11, %c0_12] : memref<2x128xf32, #tpu.memory_space<vmem>>, vector<2x128xf32>
    tpu.vector_store %arg5[%c0_11, %c0_12], %17 {strides = array<i32>} : memref<2x128xf32, #tpu.memory_space<vmem>>, vector<2x128xf32>,
    return
  }
  func.func @transform_0(%arg0: i32) -> (i32, i32, i32) {
    %c0_i32 = arith.constant 0 : i32
    %c0_i32_0 = arith.constant 0 : i32
    %c0_i32_1 = arith.constant 0 : i32
    return %arg0, %c0_i32, %c0_i32_0 : i32, i32, i32
  }
  func.func @transform_1(%arg0: i32) -> (i32, i32) {
    %c0_i32 = arith.constant 0 : i32
    %c0_i32_0 = arith.constant 0 : i32
    %c0_i32_1 = arith.constant 0 : i32
    return %c0_i32, %c0_i32_0 : i32, i32
  }
  func.func @transform_2(%arg0: i32) -> (i32, i32) {
    %c0_i32 = arith.constant 0 : i32
    %c0_i32_0 = arith.constant 0 : i32
    %c0_i32_1 = arith.constant 0 : i32
    return %c0_i32, %c0_i32_0 : i32, i32
  }
  func.func @transform_3(%arg0: i32) -> (i32, i32) {
    %c0_i32 = arith.constant 0 : i32
    %c0_i32_0 = arith.constant 0 : i32
    return %arg0, %c0_i32 : i32, i32
  }
  func.func @transform_4(%arg0: i32) -> (i32, i32) {
    %c0_i32 = arith.constant 0 : i32
    %c0_i32_0 = arith.constant 0 : i32
    return %arg0, %c0_i32 : i32, i32
  }
}

</mosaic_0001>

<llo_original>
// kernel: tpu_custom_call.1
$region0: #{tpu_custom_call.1}
  #allocation0 [shape = 'u32[]', space=smem, size = 0x4, offset = 0x4, fixed_abs, tag = 'smem constant byte address 0x4 - core index']
  #allocation1 [shape = 'u32[144,128]{1,0:T(1,128)}', space=vmem, size = 0x12000, scoped, tag = 'internal scratch']
  %s0 = inlined_call_operand.vmem [shape: f32[2,256,4], index: 0, kind: input, shape index: {}]
  %s1 = inlined_call_operand.vmem [shape: f32[4,128], index: 1, kind: input, shape index: {}]
  %s2 = inlined_call_operand.vmem [shape: f32[1,128], index: 2, kind: input, shape index: {}]
  %s3 = inlined_call_operand.hbm [shape: f32[2,128], index: 3, kind: output, shape index: {0}]
  %s4 = inlined_call_operand.hbm [shape: f32[2,128], index: 4, kind: output, shape index: {1}]
  %5 = xla_tuple %s3, %s4
  %s6 = sld [smem:[#allocation0]]
  $region30: #{tpu_custom_call.1} parent=0
    _
  %s8 = ssub.s32 1, %s6
  %s9 = scalar_select 0, %s8, %s6
  $region1: #{tpu_custom_call.1} parent=0
    #allocation2 [shape = 'u8[1024]{0}', space=vmem, size = 0x400, scoped, tag = 'output window, operand 0, single buffered']
    #allocation3 [shape = 's32[1]{0}', space=sflag, size = 0x4, scoped, tag = 'scoped memory for tpu_custom_call.1']
    #allocation4 [shape = 'u8[1024]{0}', space=vmem, size = 0x400, scoped, tag = 'output window, operand 1, single buffered']
    #allocation5 [shape = 's32[1]{0}', space=sflag, size = 0x4, scoped, tag = 'scoped memory for tpu_custom_call.1']
    %10 = vsyncpa [#allocation3], 0
    %11 = vsyncpa [#allocation5], 0
    // Predicated region
    $region2: #{tpu_custom_call.1} parent=1 // pred_check
      _
    $region3: #{tpu_custom_call.1} parent=1 // pred_check_branch
      %13 = sbr.rel (0) target = $region5
    $region4: #{tpu_custom_call.1} parent=1 // pred_region
      _
    $region5: #{tpu_custom_call.1} parent=1 // pred_fallthru
      _
    // Predicated region
    $region6: #{tpu_custom_call.1} parent=1 // pred_check
      _
    $region7: #{tpu_custom_call.1} parent=1 // pred_check_branch
      %15 = sbr.rel (0) target = $region9
    $region8: #{tpu_custom_call.1} parent=1 // pred_region
      _
    $region9: #{tpu_custom_call.1} parent=1 // pred_fallthru
      _
    // Predicated region
    $region10: #{tpu_custom_call.1} parent=1 // pred_check
      _
    $region11: #{tpu_custom_call.1} parent=1 // pred_check_branch
      %17 = sbr.rel (0) target = $region13
    $region12: #{tpu_custom_call.1} parent=1 // pred_region
      _
    $region13: #{tpu_custom_call.1} parent=1 // pred_fallthru
      _
    %v18 = vld [vmem:[%s0] sm:$0xff]
    %v19 = vld [vmem:[%s0 + $0x8] sm:$0xff]
    %v20 = vld [vmem:[%s0 + $0x10] sm:$0xff]
    %v21 = vld [vmem:[%s0 + $0x18] sm:$0xff]
    %v22 = vld [vmem:[%s0 + $0x20] sm:$0xff]
    %v23 = vld [vmem:[%s0 + $0x28] sm:$0xff]
    %v24 = vld [vmem:[%s0 + $0x30] sm:$0xff]
    %v25 = vld [vmem:[%s0 + $0x38] sm:$0xff]
    %v26 = vld [vmem:[%s0 + $0x40] sm:$0xff]
    %v27 = vld [vmem:[%s0 + $0x48] sm:$0xff]
    %v28 = vld [vmem:[%s0 + $0x50] sm:$0xff]
    %v29 = vld [vmem:[%s0 + $0x58] sm:$0xff]
    %v30 = vld [vmem:[%s0 + $0x60] sm:$0xff]
    %v31 = vld [vmem:[%s0 + $0x68] sm:$0xff]
    %v32 = vld [vmem:[%s0 + $0x70] sm:$0xff]
    %v33 = vld [vmem:[%s0 + $0x78] sm:$0xff]
    %v34 = vld [vmem:[%s0 + $0x80] sm:$0xff]
    %v35 = vld [vmem:[%s0 + $0x88] sm:$0xff]
    %v36 = vld [vmem:[%s0 + $0x90] sm:$0xff]
    %v37 = vld [vmem:[%s0 + $0x98] sm:$0xff]
    %v38 = vld [vmem:[%s0 + $0xa0] sm:$0xff]
    %v39 = vld [vmem:[%s0 + $0xa8] sm:$0xff]
    %v40 = vld [vmem:[%s0 + $0xb0] sm:$0xff]
    %v41 = vld [vmem:[%s0 + $0xb8] sm:$0xff]
    %v42 = vld [vmem:[%s0 + $0xc0] sm:$0xff]
    %v43 = vld [vmem:[%s0 + $0xc8] sm:$0xff]
    %v44 = vld [vmem:[%s0 + $0xd0] sm:$0xff]
    %v45 = vld [vmem:[%s0 + $0xd8] sm:$0xff]
    %v46 = vld [vmem:[%s0 + $0xe0] sm:$0xff]
    %v47 = vld [vmem:[%s0 + $0xe8] sm:$0xff]
    %v48 = vld [vmem:[%s0 + $0xf0] sm:$0xff]
    %v49 = vld [vmem:[%s0 + $0xf8] sm:$0xff]
    %v50 = vld [vmem:[%s0 + $0x100] sm:$0xff]
    %v51 = vld [vmem:[%s0 + $0x108] sm:$0xff]
    %v52 = vld [vmem:[%s0 + $0x110] sm:$0xff]
    %v53 = vld [vmem:[%s0 + $0x118] sm:$0xff]
    %v54 = vld [vmem:[%s0 + $0x120] sm:$0xff]
    %v55 = vld [vmem:[%s0 + $0x128] sm:$0xff]
    %v56 = vld [vmem:[%s0 + $0x130] sm:$0xff]
    %v57 = vld [vmem:[%s0 + $0x138] sm:$0xff]
    %v58 = vld [vmem:[%s0 + $0x140] sm:$0xff]
    %v59 = vld [vmem:[%s0 + $0x148] sm:$0xff]
    %v60 = vld [vmem:[%s0 + $0x150] sm:$0xff]
    %v61 = vld [vmem:[%s0 + $0x158] sm:$0xff]
    %v62 = vld [vmem:[%s0 + $0x160] sm:$0xff]
    %v63 = vld [vmem:[%s0 + $0x168] sm:$0xff]
    %v64 = vld [vmem:[%s0 + $0x170] sm:$0xff]
    %v65 = vld [vmem:[%s0 + $0x178] sm:$0xff]
    %v66 = vld [vmem:[%s0 + $0x180] sm:$0xff]
    %v67 = vld [vmem:[%s0 + $0x188] sm:$0xff]
    %v68 = vld [vmem:[%s0 + $0x190] sm:$0xff]
    %v69 = vld [vmem:[%s0 + $0x198] sm:$0xff]
    %v70 = vld [vmem:[%s0 + $0x1a0] sm:$0xff]
    %v71 = vld [vmem:[%s0 + $0x1a8] sm:$0xff]
    %v72 = vld [vmem:[%s0 + $0x1b0] sm:$0xff]
    %v73 = vld [vmem:[%s0 + $0x1b8] sm:$0xff]
    %v74 = vld [vmem:[%s0 + $0x1c0] sm:$0xff]
    %v75 = vld [vmem:[%s0 + $0x1c8] sm:$0xff]
    %v76 = vld [vmem:[%s0 + $0x1d0] sm:$0xff]
    %v77 = vld [vmem:[%s0 + $0x1d8] sm:$0xff]
    %v78 = vld [vmem:[%s0 + $0x1e0] sm:$0xff]
    %v79 = vld [vmem:[%s0 + $0x1e8] sm:$0xff]
    %v80 = vld [vmem:[%s0 + $0x1f0] sm:$0xff]
    %v81 = vld [vmem:[%s0 + $0x1f8] sm:$0xff]
    %vm82 = vcmask 31744
    %v83 = vsel %vm82, %v18, 0.0
    %v84 = vsel %vm82, %v19, 0.0
    %v85 = vadd.f32 %v83, %v84
    %v86 = vsel %vm82, %v20, 0.0
    %v87 = vadd.f32 %v85, %v86
    %v88 = vsel %vm82, %v21, 0.0
    %v89 = vadd.f32 %v87, %v88
    %v90 = vsel %vm82, %v22, 0.0
    %v91 = vadd.f32 %v89, %v90
    %v92 = vsel %vm82, %v23, 0.0
    %v93 = vadd.f32 %v91, %v92
    %v94 = vsel %vm82, %v24, 0.0
    %v95 = vadd.f32 %v93, %v94
    %v96 = vsel %vm82, %v25, 0.0
    %v97 = vadd.f32 %v95, %v96
    %v98 = vsel %vm82, %v26, 0.0
    %v99 = vadd.f32 %v97, %v98
    %v100 = vsel %vm82, %v27, 0.0
    %v101 = vadd.f32 %v99, %v100
    %v102 = vsel %vm82, %v28, 0.0
    %v103 = vadd.f32 %v101, %v102
    %v104 = vsel %vm82, %v29, 0.0
    %v105 = vadd.f32 %v103, %v104
    %v106 = vsel %vm82, %v30, 0.0
    %v107 = vadd.f32 %v105, %v106
    %v108 = vsel %vm82, %v31, 0.0
    %v109 = vadd.f32 %v107, %v108
    %v110 = vsel %vm82, %v32, 0.0
    %v111 = vadd.f32 %v109, %v110
    %v112 = vsel %vm82, %v33, 0.0
    %v113 = vadd.f32 %v111, %v112
    %v114 = vsel %vm82, %v34, 0.0
    %v115 = vadd.f32 %v113, %v114
    %v116 = vsel %vm82, %v35, 0.0
    %v117 = vadd.f32 %v115, %v116
    %v118 = vsel %vm82, %v36, 0.0
    %v119 = vadd.f32 %v117, %v118
    %v120 = vsel %vm82, %v37, 0.0
    %v121 = vadd.f32 %v119, %v120
    %v122 = vsel %vm82, %v38, 0.0
    %v123 = vadd.f32 %v121, %v122
    %v124 = vsel %vm82, %v39, 0.0
    %v125 = vadd.f32 %v123, %v124
    %v126 = vsel %vm82, %v40, 0.0
    %v127 = vadd.f32 %v125, %v126
    %v128 = vsel %vm82, %v41, 0.0
    %v129 = vadd.f32 %v127, %v128
    %v130 = vsel %vm82, %v42, 0.0
    %v131 = vadd.f32 %v129, %v130
    %v132 = vsel %vm82, %v43, 0.0
    %v133 = vadd.f32 %v131, %v132
    %v134 = vsel %vm82, %v44, 0.0
    %v135 = vadd.f32 %v133, %v134
    %v136 = vsel %vm82, %v45, 0.0
    %v137 = vadd.f32 %v135, %v136
    %v138 = vsel %vm82, %v46, 0.0
    %v139 = vadd.f32 %v137, %v138
    %v140 = vsel %vm82, %v47, 0.0
    %v141 = vadd.f32 %v139, %v140
    %v142 = vsel %vm82, %v48, 0.0
    %v143 = vadd.f32 %v141, %v142
    %v144 = vsel %vm82, %v49, 0.0
    %v145 = vadd.f32 %v143, %v144
    %v146 = vrot.slane %v145, 4
    %v147 = vadd.f32 %v145, %v146
    %v148 = vrot.slane %v147, 2
    %v149 = vadd.f32 %v147, %v148
    %v150 = vrot.slane %v149, 1
    %v151 = vadd.f32 %v149, %v150
    %v152 = vsel %vm82, %v50, 0.0
    %v153 = vsel %vm82, %v51, 0.0
    %v154 = vadd.f32 %v152, %v153
    %v155 = vsel %vm82, %v52, 0.0
    %v156 = vadd.f32 %v154, %v155
    %v157 = vsel %vm82, %v53, 0.0
    %v158 = vadd.f32 %v156, %v157
    %v159 = vsel %vm82, %v54, 0.0
    %v160 = vadd.f32 %v158, %v159
    %v161 = vsel %vm82, %v55, 0.0
    %v162 = vadd.f32 %v160, %v161
    %v163 = vsel %vm82, %v56, 0.0
    %v164 = vadd.f32 %v162, %v163
    %v165 = vsel %vm82, %v57, 0.0
    %v166 = vadd.f32 %v164, %v165
    %v167 = vsel %vm82, %v58, 0.0
    %v168 = vadd.f32 %v166, %v167
    %v169 = vsel %vm82, %v59, 0.0
    %v170 = vadd.f32 %v168, %v169
    %v171 = vsel %vm82, %v60, 0.0
    %v172 = vadd.f32 %v170, %v171
    %v173 = vsel %vm82, %v61, 0.0
    %v174 = vadd.f32 %v172, %v173
    %v175 = vsel %vm82, %v62, 0.0
    %v176 = vadd.f32 %v174, %v175
    %v177 = vsel %vm82, %v63, 0.0
    %v178 = vadd.f32 %v176, %v177
    %v179 = vsel %vm82, %v64, 0.0
    %v180 = vadd.f32 %v178, %v179
    %v181 = vsel %vm82, %v65, 0.0
    %v182 = vadd.f32 %v180, %v181
    %v183 = vsel %vm82, %v66, 0.0
    %v184 = vadd.f32 %v182, %v183
    %v185 = vsel %vm82, %v67, 0.0
    %v186 = vadd.f32 %v184, %v185
    %v187 = vsel %vm82, %v68, 0.0
    %v188 = vadd.f32 %v186, %v187
    %v189 = vsel %vm82, %v69, 0.0
    %v190 = vadd.f32 %v188, %v189
    %v191 = vsel %vm82, %v70, 0.0
    %v192 = vadd.f32 %v190, %v191
    %v193 = vsel %vm82, %v71, 0.0
    %v194 = vadd.f32 %v192, %v193
    %v195 = vsel %vm82, %v72, 0.0
    %v196 = vadd.f32 %v194, %v195
    %v197 = vsel %vm82, %v73, 0.0
    %v198 = vadd.f32 %v196, %v197
    %v199 = vsel %vm82, %v74, 0.0
    %v200 = vadd.f32 %v198, %v199
    %v201 = vsel %vm82, %v75, 0.0
    %v202 = vadd.f32 %v200, %v201
    %v203 = vsel %vm82, %v76, 0.0
    %v204 = vadd.f32 %v202, %v203
    %v205 = vsel %vm82, %v77, 0.0
    %v206 = vadd.f32 %v204, %v205
    %v207 = vsel %vm82, %v78, 0.0
    %v208 = vadd.f32 %v206, %v207
    %v209 = vsel %vm82, %v79, 0.0
    %v210 = vadd.f32 %v208, %v209
    %v211 = vsel %vm82, %v80, 0.0
    %v212 = vadd.f32 %v210, %v211
    %v213 = vsel %vm82, %v81, 0.0
    %v214 = vadd.f32 %v212, %v213
    %v215 = vrot.slane %v214, 4
    %v216 = vadd.f32 %v214, %v215
    %v217 = vrot.slane %v216, 2
    %v218 = vadd.f32 %v216, %v217
    %v219 = vrot.slane %v218, 1
    %v220 = vadd.f32 %v218, %v219
    %v221 = vld [vmem:[%s1] sm:$0xf]
    %v222 = vld [vmem:[%s2] sm:$0x1]
    %v224 = vlaneseq
    %v225 = vshrl.u32 %v224, 7
    %v226 = vsub.s32 0, %v225
    %v227 = vrot.slane %v222, %v226
    %vm231 = vcmask 1041409
    %v232 = vsel %vm231, %v220, %v151
    %v233 = vsel %vm82, %v232, 0
    %vm235 = vcmask 1043456
    %v237 = vsel %vm235, %v221, 0
    %239 = vmatprep.subr.mxu0 0.0
    %240 = vmatpush1.msra.mxu0 0.0
    %241 = vmatprep.subr.mxu0 0.0
    %242 = vmatpush1.msra.mxu0 0.0
    %243 = vmatprep.subr.mxu0 0.0
    %244 = vmatpush1.msra.mxu0 0.0
    %245 = vmatprep.subr.mxu0 0.0
    %246 = vmatpush1.msra.mxu0 0.0
    %247 = vmatprep.subr.mxu0 0.0
    %248 = vmatpush1.msra.mxu0 0.0
    %249 = vmatprep.subr.mxu0 0.0
    %250 = vmatpush1.msra.mxu0 0.0
    %251 = vmatprep.subr.mxu0 0.0
    %252 = vmatpush1.msra.mxu0 0.0
    %253 = vmatprep.subr.mxu0 0.0
    %254 = vmatpush1.msra.mxu0 0.0
    %255 = vmatprep.subr.mxu0 0.0
    %256 = vmatpush1.msra.mxu0 0.0
    %257 = vmatprep.subr.mxu0 0.0
    %258 = vmatpush1.msra.mxu0 0.0
    %259 = vmatprep.subr.mxu0 0.0
    %260 = vmatpush1.msra.mxu0 0.0
    %261 = vmatprep.subr.mxu0 0.0
    %262 = vmatpush1.msra.mxu0 0.0
    %263 = vmatprep.subr.mxu0 0.0
    %264 = vmatpush1.msra.mxu0 0.0
    %265 = vmatprep.subr.mxu0 0.0
    %266 = vmatpush1.msra.mxu0 0.0
    %267 = vmatprep.subr.mxu0 0.0
    %268 = vmatpush1.msra.mxu0 0.0
    %269 = vmatprep.subr.mxu0 0.0
    %270 = vmatpush1.msra.mxu0 %v237
    %271 = vmatprep.subr.mxu0 0.0
    %272 = vmatpush2.msra.mxu0 0.0
    %273 = vmatprep.subr.mxu0 0.0
    %274 = vmatpush2.msra.mxu0 0.0
    %275 = vmatprep.subr.mxu0 0.0
    %276 = vmatpush2.msra.mxu0 0.0
    %277 = vmatprep.subr.mxu0 0.0
    %278 = vmatpush2.msra.mxu0 0.0
    %279 = vmatprep.subr.mxu0 0.0
    %280 = vmatpush2.msra.mxu0 0.0
    %281 = vmatprep.subr.mxu0 0.0
    %282 = vmatpush2.msra.mxu0 0.0
    %283 = vmatprep.subr.mxu0 0.0
    %284 = vmatpush2.msra.mxu0 0.0
    %285 = vmatprep.subr.mxu0 0.0
    %286 = vmatpush2.msra.mxu0 0.0
    %287 = vmatprep.subr.mxu0 0.0
    %288 = vmatpush2.msra.mxu0 0.0
    %289 = vmatprep.subr.mxu0 0.0
    %290 = vmatpush2.msra.mxu0 0.0
    %291 = vmatprep.subr.mxu0 0.0
    %292 = vmatpush2.msra.mxu0 0.0
    %293 = vmatprep.subr.mxu0 0.0
    %294 = vmatpush2.msra.mxu0 0.0
    %295 = vmatprep.subr.mxu0 0.0
    %296 = vmatpush2.msra.mxu0 0.0
    %297 = vmatprep.subr.mxu0 0.0
    %298 = vmatpush2.msra.mxu0 0.0
    %299 = vmatprep.subr.mxu0 0.0
    %300 = vmatpush2.msra.mxu0 0.0
    %301 = vmatprep.subr.mxu0 0.0
    %302 = vmatpush2.msra.mxu0 0.0
    %303 = vmatprep.mubr.f32.mxu0 0.0
    %304 = vmatmul.mubr.f32.gmra.mxu0 %v233
    %v305 = vpop.f32.mrf.mxu0
    %v306 = vadd.f32 %v227, %v305
    %v307 = vpop.f32.mrf.mxu0
    %308 = vdwg.mxu0
    %309 = vst [vmem:[#allocation2] sm:$0x3] %v306
    %vm310 = vcmask 1041408
    %v311 = vsel %vm310, %v306, -inf
    %312 = vmax.xlane.f32.xlu0 %v311
    %v313 = vpop.xlane.xlu0 %312
    %v314 = vsub.f32 %v306, %v313
    %v315 = vmul.f32 %v314, 1.442695
    %v316 = vpow.pop %v315
    %v317 = vsel %vm310, %v316, 0.0
    %318 = vadd.xlane.f32.xlu0 %v317
    %v319 = vpop.xlane.xlu0 %318
    %v320 = vrcp.pop %v319
    %v321 = vmul.f32 %v316, %v320
    %322 = vst [vmem:[#allocation4] sm:$0x3] %v321
    // Predicated region
    $region14: #{tpu_custom_call.1} parent=1 // pred_check
      _
    $region15: #{tpu_custom_call.1} parent=1 // pred_check_branch
      %324 = sbr.rel (0) target = $region17
    $region16: #{tpu_custom_call.1} parent=1 // pred_region
      %s326 = ssub.s32 32, 32
      %327 = vsyncadd [#allocation3], %s326
      %s329 = sshll.u32 [#allocation2], 4
      %s330 = int_to_ptr.vmem [resolvable:$true] %s329
      %332 = dma.vmem_to_hbm [thread:$0]  %s330, 32, %s3, [#allocation3]
    $region17: #{tpu_custom_call.1} parent=1 // pred_fallthru
      _
    // Predicated region
    $region18: #{tpu_custom_call.1} parent=1 // pred_check
      _
    $region19: #{tpu_custom_call.1} parent=1 // pred_check_branch
      %334 = sbr.rel (0) target = $region21
    $region20: #{tpu_custom_call.1} parent=1 // pred_region
      %s336 = ssub.s32 32, 32
      %337 = vsyncadd [#allocation5], %s336
      %s339 = sshll.u32 [#allocation4], 4
      %s340 = int_to_ptr.vmem [resolvable:$true] %s339
      %342 = dma.vmem_to_hbm [thread:$0]  %s340, 32, %s4, [#allocation5]
    $region21: #{tpu_custom_call.1} parent=1 // pred_fallthru
      _
    // Predicated region
    $region22: #{tpu_custom_call.1} parent=1 // pred_check
      _
    $region23: #{tpu_custom_call.1} parent=1 // pred_check_branch
      %344 = sbr.rel (0) target = $region25
    $region24: #{tpu_custom_call.1} parent=1 // pred_region
      %345 = dma.done [#allocation3], 32
    $region25: #{tpu_custom_call.1} parent=1 // pred_fallthru
      _
    // Predicated region
    $region26: #{tpu_custom_call.1} parent=1 // pred_check
      _
    $region27: #{tpu_custom_call.1} parent=1 // pred_check_branch
      %347 = sbr.rel (0) target = $region29
    $region28: #{tpu_custom_call.1} parent=1 // pred_region
      %348 = dma.done [#allocation5], 32
    $region29: #{tpu_custom_call.1} parent=1 // pred_fallthru
      _
    %349 = vsyncpa [#allocation3], 1
    %350 = vsyncpa [#allocation5], 1

</llo_original>
